<compile_context>
chip_gen: v6e
topology: v6e:2x2x1
jax: 0.10.0
libtpu: 0.0.40
codegen_flags: <defaults>
</compile_context>

<pallas_src>
import functools

import jax
import jax.numpy as jnp
from jax import lax
from jax.experimental import pallas as pl
from jax.experimental.pallas import tpu as pltpu


# ----------------------------------------------------------------------------
# Tunables
# ----------------------------------------------------------------------------
_LANE = 128                           # lane width (last-dim tiling)
_SUBLANE = 16                         # row alignment covering f32 and bf16
_VMEM_BUDGET = 40 * 1024 * 1024       # working-set target (fits v7x 64 MiB)
_VMEM_LIMIT = 48 * 1024 * 1024        # scoped-VMEM request, safe on v5e/v6e/v7x
_SINGLE_BUFFER_MIN_BYTES = 2 * 1024 * 1024   # single-buffer resident blocks above this
_STREAM_DTYPE = jnp.bfloat16          # streaming dtype when a pad copy is made anyway


# ----------------------------------------------------------------------------
# Helpers
# ----------------------------------------------------------------------------
def _round_up(n, m):
    return ((n + m - 1) // m) * m


def _resident_spec(block_shape, index_map, nbytes):
    """BlockSpec for a block whose index is constant along the reduction axis.

    Such blocks are DMA'd at most once per outer step; above a size threshold
    we request a single VMEM buffer instead of the default double buffer
    (halves its footprint - matters for large F on v7x's 64 MiB VMEM)."""
    if nbytes >= _SINGLE_BUFFER_MIN_BYTES:
        try:
            return pl.BlockSpec(block_shape, index_map, pipeline_mode=pl.Buffered(1))
        except Exception:  # older jax without pipeline_mode / Buffered support
            pass
    return pl.BlockSpec(block_shape, index_map)


def _prepare_activations(x):
    """Lane-dense view of x for the kernels.

    * F % 128 == 0  -> stream x exactly as given (zero host copies).
    * otherwise     -> one fused pad+cast to bf16; batch padded only to a
                       multiple of 16 (NOT the batch tile), reused by both
                       kernels in training.
    Returns (x_streamed, true_batch, true_feats)."""
    b, f = x.shape
    fp = _round_up(f, _LANE)
    if fp == f:
        return x, b, f
    bp = _round_up(b, _SUBLANE)
    xp = jnp.pad(x.astype(_STREAM_DTYPE), ((0, bp - b), (0, fp - f)))
    return xp, b, f


def _prepare_matrix(m, fp, dtype):
    """Pad/cast a tiny (F, F) parameter matrix to (fp, fp) in `dtype`."""
    f = m.shape[0]
    mp = m.astype(dtype)
    if fp != f:
        mp = jnp.pad(mp, ((0, fp - f), (0, fp - f)))
    return mp


def _pick_batch_tile(n_rows, fixed_vmem, per_row_vmem, tm, fp):
    """Batch tile: big when F is small (amortize per-step overhead), shrunk
    until the double-buffered working set fits the VMEM budget."""
    if tm is None:
        tm = 2048 if fp <= 256 else (1024 if fp <= 1024 else 512)
    tm = min(tm, n_rows)
    while tm > _SUBLANE and fixed_vmem + tm * per_row_vmem > _VMEM_BUDGET:
        tm //= 2
    if tm < n_rows:                         # full-dim blocks are exempt from tiling rules
        tm = max(_SUBLANE, (tm // _SUBLANE) * _SUBLANE)
    return tm


# ----------------------------------------------------------------------------
# Kernels
# ----------------------------------------------------------------------------
def _proj_kernel(x_ref, l_ref, o_ref):
    """One batch tile of y = x @ L (MXU, f32 accumulation).

    Ragged last batch tiles need no masking here: Pallas drops the
    out-of-bounds rows of the output block on store."""
    o_ref[...] = jnp.dot(
        x_ref[...], l_ref[...], preferred_element_type=jnp.float32
    ).astype(o_ref.dtype)


def _cov_kernel(*refs, alpha, inv_batch, n_rows, block_rows, split):
    """Accumulate x.T @ x over batch tiles into the resident output block.

    The (1-alpha)*S blend and alpha/B scale are applied once in the finalize
    step, so the inner reduction loop carries no extra VALU multiplies."""
    if split:
        xl_ref, xr_ref, s_ref, o_ref = refs
    else:
        xl_ref, s_ref, o_ref = refs
        xr_ref = None

    bi = pl.program_id(1)                       # batch (reduction) axis

    @pl.when(bi == 0)
    def _():
        o_ref[...] = jnp.zeros_like(o_ref)

    def _masked(ref):
        v = ref[...]
        if n_rows % block_rows != 0:
            # Ragged last batch tile: out-of-bounds rows hold unspecified
            # data -> zero them so they cannot pollute the reduction.
            rows = bi * block_rows + lax.broadcasted_iota(jnp.int32, v.shape, 0)
            v = jnp.where(rows < n_rows, v, jnp.zeros_like(v))
        return v

    xl = _masked(xl_ref)
    xr = xl if xr_ref is None else _masked(xr_ref)

    # x.T @ x expressed as a contraction over dim 0 of both operands (no
    # explicit transpose -> feeds the MXU directly, no XLU pass).
    o_ref[...] += lax.dot_general(
        xl, xr,
        dimension_numbers=(((0,), (0,)), ((), ())),
        preferred_element_type=jnp.float32,
    )

    @pl.when(bi == pl.num_programs(1) - 1)
    def _():
        o_ref[...] = (1.0 - alpha) * s_ref[...] + (alpha * inv_batch) * o_ref[...]


# ----------------------------------------------------------------------------
# Pallas wrappers
# ----------------------------------------------------------------------------
def pallas_project(x_s, L, *, n_rows, n_feats, out_dtype, tm=None):
    """y = x @ L with L held resident in VMEM and x streamed in batch tiles."""
    rows_arr, fp = x_s.shape
    l_s = _prepare_matrix(L, fp, x_s.dtype)

    x_b = jnp.dtype(x_s.dtype).itemsize
    o_b = jnp.dtype(out_dtype).itemsize
    l_bytes = fp * fp * jnp.dtype(l_s.dtype).itemsize
    l_bufs = 1 if l_bytes >= _SINGLE_BUFFER_MIN_BYTES else 2
    per_row = 2 * fp * (x_b + o_b)              # double-buffered x / out tiles
    tm = _pick_batch_tile(rows_arr, l_bufs * l_bytes, per_row, tm, fp)
    # TODO(synk): for very large F (resident L >> VMEM budget) add N/K tiling
    # of L with a scratch accumulator; typical CholeskyLayer feature dims fit.

    out = pl.pallas_call(
        _proj_kernel,
        out_shape=jax.ShapeDtypeStruct((rows_arr, fp), out_dtype),
        grid_spec=pltpu.PrefetchScalarGridSpec(
            num_scalar_prefetch=0,
            grid=(pl.cdiv(rows_arr, tm),),
            in_specs=[
                pl.BlockSpec((tm, fp), lambda i: (i, 0)),             # streamed x
                _resident_spec((fp, fp), lambda i: (0, 0), l_bytes),  # resident L
            ],
            out_specs=pl.BlockSpec((tm, fp), lambda i: (i, 0)),
        ),
        compiler_params=pltpu.CompilerParams(
            dimension_semantics=("parallel",),
            vmem_limit_bytes=_VMEM_LIMIT,
        ),
        cost_estimate=pl.CostEstimate(
            flops=2 * rows_arr * fp * fp,
            transcendentals=0,
            bytes_accessed=rows_arr * fp * (x_b + o_b) + l_bytes,
        ),
    )(x_s, l_s)

    if rows_arr != n_rows or fp != n_feats:
        out = out[:n_rows, :n_feats]
    return out


def pallas_cov_update(x_s, S, alpha, *, batch_size, n_feats, tm=None):
    """S' = (1-alpha)*S + alpha*(x.T @ x)/batch_size, streamed over batch tiles.

    For larger feature dims the output columns get their own *parallel* grid
    axis (two column tiles), sharding the reduction across both v7x
    TensorCores and shrinking the resident accumulator per core."""
    rows_arr, fp = x_s.shape
    s_s = _prepare_matrix(S, fp, jnp.float32)

    # Column tiling: single tile for small F (x read exactly once - the
    # memory-bound regime); two tiles for larger, MXU-bound F.
    tn = fp // 2 if (fp >= 512 and fp % 256 == 0) else fp
    split = tn != fp
    n_col = fp // tn

    x_b = jnp.dtype(x_s.dtype).itemsize
    s_bytes = fp * tn * 4
    s_bufs = 1 if s_bytes >= _SINGLE_BUFFER_MIN_BYTES else 2
    fixed = 2 * fp * tn * 4 + s_bufs * s_bytes           # resident acc + S block
    per_row = 2 * fp * x_b + (2 * tn * x_b if split else 0)
    tm = _pick_batch_tile(rows_arr, fixed, per_row, tm, fp)
    n_batch = pl.cdiv(rows_arr, tm)

    kernel = functools.partial(
        _cov_kernel,
        alpha=float(alpha),
        inv_batch=1.0 / float(batch_size),
        n_rows=rows_arr,
        block_rows=tm,
        split=split,
    )

    lhs_spec = pl.BlockSpec((tm, fp), lambda j, i: (i, 0))
    s_spec = _resident_spec((fp, tn), lambda j, i: (0, j), s_bytes)
    if split:
        in_specs = [lhs_spec,
                    pl.BlockSpec((tm, tn), lambda j, i: (i, j)),
                    s_spec]
        operands = (x_s, x_s, s_s)
    else:
        in_specs = [lhs_spec, s_spec]
        operands = (x_s, s_s)

    out = pl.pallas_call(
        kernel,
        out_shape=jax.ShapeDtypeStruct((fp, fp), jnp.float32),
        grid_spec=pltpu.PrefetchScalarGridSpec(
            num_scalar_prefetch=0,
            grid=(n_col, n_batch),
            in_specs=in_specs,
            out_specs=pl.BlockSpec((fp, tn), lambda j, i: (0, j)),
        ),
        compiler_params=pltpu.CompilerParams(
            dimension_semantics=("parallel", "arbitrary"),
            vmem_limit_bytes=_VMEM_LIMIT,
        ),
        cost_estimate=pl.CostEstimate(
            flops=2 * rows_arr * fp * fp,
            transcendentals=0,
            bytes_accessed=(n_col + (1 if split else 0)) * rows_arr * fp * x_b
            + 2 * fp * fp * 4,
        ),
    )(*operands)

    if fp != n_feats:
        out = out[:n_feats, :n_feats]
    return out


# ----------------------------------------------------------------------------
# CholeskyLayer equivalent
# ----------------------------------------------------------------------------
class CholeskyLayerPallas:
    """JAX/Pallas port of the prcut CholeskyLayer forward pass."""

    def __init__(self, n_feats, alpha=0.1, eps=1e-6):
        self.n_feats = n_feats
        self.alpha = alpha
        self.eps = eps
        # Deterministic parameter init, matching torch.eye(n_feats).
        self.L = jnp.eye(n_feats, dtype=jnp.float32)        # cholesky_inv
        self.S = jnp.eye(n_feats, dtype=jnp.float32)        # sigma
        self.eps_eye = eps * jnp.eye(n_feats, dtype=jnp.float32)

    def forward(self, x, training=False):
        # One shared lane-dense view of x, reused by both kernels in training.
        x_s, batch, feats = _prepare_activations(x)
        if training:
            # Running-covariance update (Pallas kernel: blended x.T @ x).
            self.S = pallas_cov_update(
                x_s, self.S, self.alpha, batch_size=batch, n_feats=feats)
            # TODO(synk): Cholesky factorization + triangular inverse have no
            # clean Pallas equivalent; computed with jnp / jax.scipy glue on
            # the tiny (F, F) matrix.
            chol = jnp.linalg.cholesky(self.S + self.eps_eye)
            eye = jnp.eye(self.n_feats, dtype=chol.dtype)
            self.L = jax.scipy.linalg.solve_triangular(chol, eye, lower=True).T
        # Hot path: y = x @ L (Pallas MXU matmul, batch-tiled, resident L).
        return pallas_project(
            x_s, self.L, n_rows=batch, n_feats=feats, out_dtype=x.dtype)


# ----------------------------------------------------------------------------
# Demo / correctness check
# ----------------------------------------------------------------------------
if __name__ == "__main__":
    key, key2 = jax.random.split(jax.random.PRNGKey(0))

    # --- Small shapes matching the module (feature dim padded 32 -> 128) ----
    batch, n_feats = 8, 32
    x = jax.random.normal(key, (batch, n_feats), dtype=jnp.float32)

    layer = CholeskyLayerPallas(n_feats, alpha=0.1, eps=1e-6)

    # Eval-mode forward (L == I): bf16-streaming-level tolerance.
    y_eval = layer.forward(x, training=False)
    jax.block_until_ready(y_eval)
    assert y_eval.shape == (batch, n_feats) and y_eval.dtype == x.dtype
    assert jnp.allclose(y_eval, x, atol=2e-2, rtol=2e-2), "eval forward mismatch"

    # Training-mode forward: S/L update + whitening projection.
    y_train = layer.forward(x, training=True)
    jax.block_until_ready(y_train)

    S_ref = (1.0 - 0.1) * jnp.eye(n_feats) + 0.1 * (x.T @ x) / batch
    assert jnp.allclose(layer.S, S_ref, atol=2e-2, rtol=2e-2), "S update mismatch"
    y_ref = x @ layer.L
    assert jnp.allclose(y_train, y_ref, atol=5e-2, rtol=5e-2), "train forward mismatch"

    # --- Aligned-feature path (zero host copies), ragged batch tiles, and the
    #     column-split covariance kernel (v7x two-core variant). -------------
    b2, f2 = 40, 512
    x2 = jax.random.normal(key2, (b2, f2), dtype=jnp.float32)
    eye2 = jnp.eye(f2, dtype=jnp.float32)

    S2 = pallas_cov_update(x2, eye2, 0.1, batch_size=b2, n_feats=f2, tm=16)
    S2_ref = 0.9 * eye2 + 0.1 * (x2.T @ x2) / b2
    assert jnp.allclose(S2, S2_ref, atol=2e-2, rtol=2e-2), "split cov mismatch"

    y2 = pallas_project(x2, eye2, n_rows=b2, n_feats=f2,
                        out_dtype=x2.dtype, tm=16)
    assert jnp.allclose(y2, x2, atol=2e-2, rtol=2e-2), "ragged projection mismatch"
    jax.block_until_ready((S2, y2))

    print("KERNEL_OK")
</pallas_src>

<mosaic_0001>
module attributes {stable_mosaic.version = 11 : i64} {
  func.func @_proj_kernel(%arg0: i32, %arg1: memref<16x128xbf16, #tpu.memory_space<vmem>>, %arg2: memref<128x128xbf16, #tpu.memory_space<vmem>>, %arg3: memref<16x128xf32, #tpu.memory_space<vmem>>) attributes {dimension_semantics = [#tpu.dimension_semantics<parallel>], iteration_bounds = array<i64: 1>, scalar_prefetch = 0 : i64, scratch_operands = 0 : i64, tpu.core_type = #tpu.core_type<tc>, window_params = [{transform_indices = @transform_0, window_bounds = array<i64: 16, 128>}, {pipeline_mode = #tpu.pipeline_mode<synchronous>, transform_indices = @transform_1, window_bounds = array<i64: 128, 128>}, {transform_indices = @transform_2, window_bounds = array<i64: 16, 128>}]} {
    %c0 = arith.constant 0 : index
    %c0_0 = arith.constant 0 : index
    %0 = vector.load %arg1[%c0, %c0_0] : memref<16x128xbf16, #tpu.memory_space<vmem>>, vector<16x128xbf16>
    %c0_1 = arith.constant 0 : index
    %c0_2 = arith.constant 0 : index
    %1 = vector.load %arg2[%c0_1, %c0_2] : memref<128x128xbf16, #tpu.memory_space<vmem>>, vector<128x128xbf16>
    %cst = arith.constant dense<0.000000e+00> : vector<16x128xf32>
    %2 = tpu.matmul %0, %1, %cst {dimension_numbers = #tpu.dot_dimension_numbers<[1], [0], [0], [1], [0, 0, 1, 1], [], []>} : vector<16x128xbf16>, vector<128x128xbf16>, vector<16x128xf32> -> vector<16x128xf32>
    %c0_3 = arith.constant 0 : index
    %c0_4 = arith.constant 0 : index
    %3 = vector.load %arg3[%c0_3, %c0_4] : memref<16x128xf32, #tpu.memory_space<vmem>>, vector<16x128xf32>
    tpu.vector_store %arg3[%c0_3, %c0_4], %2 {strides = array<i32>} : memref<16x128xf32, #tpu.memory_space<vmem>>, vector<16x128xf32>,
    return
  }
  func.func @transform_0(%arg0: i32) -> (i32, i32) {
    %c0_i32 = arith.constant 0 : i32
    %c0_i32_0 = arith.constant 0 : i32
    return %arg0, %c0_i32 : i32, i32
  }
  func.func @transform_1(%arg0: i32) -> (i32, i32) {
    %c0_i32 = arith.constant 0 : i32
    %c0_i32_0 = arith.constant 0 : i32
    %c0_i32_1 = arith.constant 0 : i32
    return %c0_i32, %c0_i32_0 : i32, i32
  }
  func.func @transform_2(%arg0: i32) -> (i32, i32) {
    %c0_i32 = arith.constant 0 : i32
    %c0_i32_0 = arith.constant 0 : i32
    return %arg0, %c0_i32 : i32, i32
  }
}

</mosaic_0001>

<llo_original>
// kernel: tpu_custom_call.1
$region0: #{tpu_custom_call.1}
  #allocation0 [shape = 'u32[]', space=smem, size = 0x4, offset = 0x4, fixed_abs, tag = 'smem constant byte address 0x4 - core index']
  #allocation1 [shape = 'u32[144,128]{1,0:T(1,128)}', space=vmem, size = 0x12000, scoped, tag = 'internal scratch']
  %s0 = inlined_call_operand.hbm [shape: bf16[16,128], index: 0, kind: input, shape index: {}]
  %s1 = inlined_call_operand.hbm [shape: bf16[128,128], index: 1, kind: input, shape index: {}]
  %s2 = inlined_call_operand.hbm [shape: f32[16,128], index: 2, kind: output, shape index: {}]
  %s3 = sld [smem:[#allocation0]]
  $region26: #{tpu_custom_call.1} parent=0
    _
  %s5 = ssub.s32 1, %s3
  %s6 = scalar_select 0, %s5, %s3
  $region1: #{tpu_custom_call.1} parent=0
    #allocation2 [shape = 'u8[4096]{0}', space=vmem, size = 0x1000, scoped, tag = 'input window, operand 0, single buffered']
    #allocation3 [shape = 's32[1]{0}', space=sflag, size = 0x4, scoped, tag = 'scoped memory for tpu_custom_call.1']
    #allocation4 [shape = 's32[1]{0}', space=sflag, size = 0x4, scoped, tag = 'scoped memory for tpu_custom_call.1']
    #allocation5 [shape = 'u8[32768]{0}', space=vmem, size = 0x8000, scoped, tag = 'input window, operand 1, single buffered']
    #allocation6 [shape = 's32[1]{0}', space=sflag, size = 0x4, scoped, tag = 'scoped memory for tpu_custom_call.1']
    #allocation7 [shape = 'u8[8192]{0}', space=vmem, size = 0x2000, scoped, tag = 'output window, operand 0, single buffered']
    %7 = vsyncpa [#allocation3], 0
    %8 = vsyncpa [#allocation6], 0
    %9 = vsyncpa [#allocation4], 0
    // Predicated region
    $region2: #{tpu_custom_call.1} parent=1 // pred_check
      _
    $region3: #{tpu_custom_call.1} parent=1 // pred_check_branch
      %11 = sbr.rel (0) target = $region5
    $region4: #{tpu_custom_call.1} parent=1 // pred_region
      %s13 = ssub.s32 128, 128
      %14 = vsyncadd [#allocation3], %s13
      %s15 = sshll.u32 [#allocation2], 4
      %s16 = int_to_ptr.vmem [resolvable:$true] %s15
      %21 = dma.hbm_to_vmem [thread:$0]  %s0, 128, %s16, [#allocation3], 64, 64, 4
    $region5: #{tpu_custom_call.1} parent=1 // pred_fallthru
      _
    // Predicated region
    $region6: #{tpu_custom_call.1} parent=1 // pred_check
      _
    $region7: #{tpu_custom_call.1} parent=1 // pred_check_branch
      %23 = sbr.rel (0) target = $region9
    $region8: #{tpu_custom_call.1} parent=1 // pred_region
      %s25 = ssub.s32 1024, 1024
      %26 = vsyncadd [#allocation6], %s25
      %s27 = sshll.u32 [#allocation5], 4
      %s28 = int_to_ptr.vmem [resolvable:$true] %s27
      %33 = dma.hbm_to_vmem [thread:$0]  %s1, 1024, %s28, [#allocation6], 64, 64, 4
    $region9: #{tpu_custom_call.1} parent=1 // pred_fallthru
      _
    // Predicated region
    $region10: #{tpu_custom_call.1} parent=1 // pred_check
      _
    $region11: #{tpu_custom_call.1} parent=1 // pred_check_branch
      %35 = sbr.rel (0) target = $region13
    $region12: #{tpu_custom_call.1} parent=1 // pred_region
      %36 = dma.done [#allocation3], 128
    $region13: #{tpu_custom_call.1} parent=1 // pred_fallthru
      _
    // Predicated region
    $region14: #{tpu_custom_call.1} parent=1 // pred_check
      _
    $region15: #{tpu_custom_call.1} parent=1 // pred_check_branch
      %38 = sbr.rel (0) target = $region17
    $region16: #{tpu_custom_call.1} parent=1 // pred_region
      %39 = dma.done [#allocation6], 1024
    $region17: #{tpu_custom_call.1} parent=1 // pred_fallthru
      _
    %v41 = vld [vmem:[#allocation2] sm:$0xf]
    %v42 = vld [vmem:[#allocation2 + $0x4] sm:$0xf]
    %v43 = vld [vmem:[#allocation5] sm:$0xf]
    %v44 = vld [vmem:[#allocation5 + $0x4] sm:$0xf]
    %v45 = vld [vmem:[#allocation5 + $0x8] sm:$0xf]
    %v46 = vld [vmem:[#allocation5 + $0xc] sm:$0xf]
    %v47 = vld [vmem:[#allocation5 + $0x10] sm:$0xf]
    %v48 = vld [vmem:[#allocation5 + $0x14] sm:$0xf]
    %v49 = vld [vmem:[#allocation5 + $0x18] sm:$0xf]
    %v50 = vld [vmem:[#allocation5 + $0x1c] sm:$0xf]
    %v51 = vld [vmem:[#allocation5 + $0x20] sm:$0xf]
    %v52 = vld [vmem:[#allocation5 + $0x24] sm:$0xf]
    %v53 = vld [vmem:[#allocation5 + $0x28] sm:$0xf]
    %v54 = vld [vmem:[#allocation5 + $0x2c] sm:$0xf]
    %v55 = vld [vmem:[#allocation5 + $0x30] sm:$0xf]
    %v56 = vld [vmem:[#allocation5 + $0x34] sm:$0xf]
    %v57 = vld [vmem:[#allocation5 + $0x38] sm:$0xf]
    %v58 = vld [vmem:[#allocation5 + $0x3c] sm:$0xf]
    %v61 = vunpack.c.l.b16 %v41
    %v62 = vunpack.c.l.b16 %v42
    %v63 = vpack.c.b16 %v62, %v61
    %v81 = vunpack.c.l.b16 %v43
    %v82 = vunpack.c.l.b16 %v44
    %v83 = vunpack.c.l.b16 %v45
    %v84 = vunpack.c.l.b16 %v46
    %v85 = vunpack.c.l.b16 %v47
    %v86 = vunpack.c.l.b16 %v48
    %v87 = vunpack.c.l.b16 %v49
    %v88 = vunpack.c.l.b16 %v50
    %v89 = vunpack.c.l.b16 %v51
    %v90 = vunpack.c.l.b16 %v52
    %v91 = vunpack.c.l.b16 %v53
    %v92 = vunpack.c.l.b16 %v54
    %v93 = vunpack.c.l.b16 %v55
    %v94 = vunpack.c.l.b16 %v56
    %v95 = vunpack.c.l.b16 %v57
    %v96 = vunpack.c.l.b16 %v58
    %v97 = vpack.c.b16 %v82, %v81
    %v98 = vpack.c.b16 %v84, %v83
    %v99 = vpack.c.b16 %v86, %v85
    %v100 = vpack.c.b16 %v88, %v87
    %v101 = vpack.c.b16 %v90, %v89
    %v102 = vpack.c.b16 %v92, %v91
    %v103 = vpack.c.b16 %v94, %v93
    %v104 = vpack.c.b16 %v96, %v95
    %113 = vmatprep.subr.bf16.mxu0 0
    %114 = vmatpush1.bf16.msra.mxu0 %v104
    %115 = vmatprep.subr.bf16.mxu0 0
    %116 = vmatpush1.bf16.msra.mxu0 %v103
    %117 = vmatprep.subr.bf16.mxu0 0
    %118 = vmatpush1.bf16.msra.mxu0 %v102
    %119 = vmatprep.subr.bf16.mxu0 0
    %120 = vmatpush1.bf16.msra.mxu0 %v101
    %121 = vmatprep.subr.bf16.mxu0 0
    %122 = vmatpush1.bf16.msra.mxu0 %v100
    %123 = vmatprep.subr.bf16.mxu0 0
    %124 = vmatpush1.bf16.msra.mxu0 %v99
    %125 = vmatprep.subr.bf16.mxu0 0
    %126 = vmatpush1.bf16.msra.mxu0 %v98
    %127 = vmatprep.subr.bf16.mxu0 0
    %128 = vmatpush1.bf16.msra.mxu0 %v97
    %129 = vmatprep.subr.bf16.mxu0 0
    %130 = vmatpush2.bf16.msra.mxu0 0
    %131 = vmatprep.subr.bf16.mxu0 0
    %132 = vmatpush2.bf16.msra.mxu0 0
    %133 = vmatprep.subr.bf16.mxu0 0
    %134 = vmatpush2.bf16.msra.mxu0 0
    %135 = vmatprep.subr.bf16.mxu0 0
    %136 = vmatpush2.bf16.msra.mxu0 0
    %137 = vmatprep.subr.bf16.mxu0 0
    %138 = vmatpush2.bf16.msra.mxu0 0
    %139 = vmatprep.subr.bf16.mxu0 0
    %140 = vmatpush2.bf16.msra.mxu0 0
    %141 = vmatprep.subr.bf16.mxu0 0
    %142 = vmatpush2.bf16.msra.mxu0 0
    %143 = vmatprep.subr.bf16.mxu0 0
    %144 = vmatpush2.bf16.msra.mxu0 0
    %145 = vmatprep.mubr.bf16.mxu0 0
    %146 = vmatmul.mubr.bf16.gmra.mxu0 %v63
    %v147 = vpop.f32.mrf.mxu0
    %v148 = vadd.f32 0.0, %v147
    %v149 = vpop.f32.mrf.mxu0
    %v150 = vpop.f32.mrf.mxu0
    %v151 = vadd.f32 0.0, %v150
    %v152 = vpop.f32.mrf.mxu0
    %153 = vdwg.mxu0
    %154 = vst [vmem:[#allocation7] sm:$0xff] %v148
    %155 = vst [vmem:[#allocation7 + $0x8] sm:$0xff] %v151
    // Predicated region
    $region18: #{tpu_custom_call.1} parent=1 // pred_check
      _
    $region19: #{tpu_custom_call.1} parent=1 // pred_check_branch
      %157 = sbr.rel (0) target = $region21
    $region20: #{tpu_custom_call.1} parent=1 // pred_region
      %s159 = ssub.s32 256, 256
      %160 = vsyncadd [#allocation4], %s159
      %s161 = sshll.u32 [#allocation7], 4
      %s162 = int_to_ptr.vmem [resolvable:$true] %s161
      %167 = dma.vmem_to_hbm [thread:$0]  %s162, 256, %s2, [#allocation4], 128, 128, 8
    $region21: #{tpu_custom_call.1} parent=1 // pred_fallthru
      _
    // Predicated region
    $region22: #{tpu_custom_call.1} parent=1 // pred_check
      _
    $region23: #{tpu_custom_call.1} parent=1 // pred_check_branch
      %169 = sbr.rel (0) target = $region25
    $region24: #{tpu_custom_call.1} parent=1 // pred_region
      %170 = dma.done [#allocation4], 256
    $region25: #{tpu_custom_call.1} parent=1 // pred_fallthru
      _
    %171 = vsyncpa [#allocation3], 1
    %172 = vsyncpa [#allocation6], 1
    %173 = vsyncpa [#allocation4], 1

</llo_original>
